<compile_context>
chip_gen: v5e
topology: v5e:2x2
jax: 0.10.0
libtpu: 0.0.40
codegen_flags: <defaults>
</compile_context>

<pallas_src>
import functools

import jax
import jax.numpy as jnp
from jax.experimental import pallas as pl
from jax.experimental.pallas import tpu as pltpu


_SUBLANE = 8  # f32 sublane tile


def _round_up(x, m):
    return (x + m - 1) // m * m


def _leaky_relu(x, alpha=0.2):
    return jnp.where(x > 0, x, alpha * x)


def _irevnet_block_kernel(x1_ref, x2_ref, masks_ref, w1_ref, w2_ref, w3_ref,
                          y1_ref, *, W):
    """One grid step: a whole batch block, channels-major (Cp, nb*H*W)."""
    nbL = x2_ref.shape[1]
    masks = masks_ref[...]                               # (9, nbL) f32
    mask_rows = [masks[t:t + 1, :] for t in range(9)]    # hoisted row slices
    w1 = w1_ref[...]                                     # bf16, pre-flattened
    w2 = w2_ref[...]
    w3 = w3_ref[...]

    def conv3x3(a, w):
        """3x3 'same' conv as a single im2col matmul.

        a: (CinP, nbL) f32 activations (batch folded along lanes).
        w: (CoutP, 9*CinP) bf16; columns indexed by (ky*3+kx)*CinP + cin.
        Wrapped taps (image edges / image boundaries inside the folded lane
        axis) are zeroed by the per-tap masks, so the cyclic roll is exact.
        """
        taps = []
        t = 0
        for ky in range(3):
            for kx in range(3):
                d = (ky - 1) * W + (kx - 1)
                # want s[..., p] = a[..., (p + d) % nbL]  ==  roll by -d
                s = a if d == 0 else pltpu.roll(a, (-d) % nbL, axis=1)
                if not (ky == 1 and kx == 1):            # center tap: all-ones
                    s = s * mask_rows[t]
                taps.append(s)
                t += 1
        patches = jnp.concatenate(taps, axis=0).astype(jnp.bfloat16)  # (9*CinP, nbL)
        return jax.lax.dot_general(
            w, patches,
            dimension_numbers=(((1,), (0,)), ((), ())),
            preferred_element_type=jnp.float32)          # (CoutP, nbL) f32

    # bottleneck_block: LReLU -> conv1 -> LReLU -> conv2 -> Dropout(p=0)
    #                   -> LReLU -> conv3
    a = _leaky_relu(x2_ref[...].astype(jnp.float32))     # (CinP, nbL)
    h = conv3x3(a, w1)                                   # (HidP, nbL)
    h = conv3x3(_leaky_relu(h), w2)                      # (HidP, nbL)
    fx2 = conv3x3(_leaky_relu(h), w3)                    # (CoutP, nbL)
    y1_ref[...] = (fx2 + x1_ref[...].astype(jnp.float32)).astype(y1_ref.dtype)


def _flatten_conv_weight(w_oihw, cin_pad, cout_pad):
    """(Cout, Cin, 3, 3) torch layout -> (cout_pad, 9*cin_pad) bf16,
    columns indexed by (ky*3 + kx)*cin_pad + cin (matches the kernel's taps)."""
    cout, cin, kh, kw = w_oihw.shape
    w = jnp.transpose(w_oihw, (2, 3, 1, 0))                             # (3,3,Cin,Cout)
    w = jnp.pad(w, ((0, 0), (0, 0), (0, cin_pad - cin), (0, cout_pad - cout)))
    w = w.reshape(kh * kw * cin_pad, cout_pad)
    return jnp.transpose(w).astype(jnp.bfloat16)                        # (cout_pad, 9*cin_pad)


def _make_tap_masks(H, W):
    """(9, H*W) f32 0/1 masks: zero out taps that sample outside the image."""
    r = jnp.arange(H, dtype=jnp.float32).reshape(H, 1)
    c = jnp.arange(W, dtype=jnp.float32).reshape(1, W)
    rows = []
    for ky in range(3):
        for kx in range(3):
            m = jnp.ones((H, W), jnp.float32)
            if ky == 0:
                m = m * (r > 0)
            if ky == 2:
                m = m * (r < H - 1)
            if kx == 0:
                m = m * (c > 0)
            if kx == 2:
                m = m * (c < W - 1)
            rows.append(m.reshape(1, H * W))
    return jnp.concatenate(rows, axis=0)


def _choose_batch_block(N, per_image_bytes, budget_bytes=8 << 20):
    """Largest divisor of N fitting the VMEM budget, keeping grid >= 2 steps
    (so the 'parallel' axis feeds both v7x TensorCores) when N allows it."""
    nb_cap = max(1, budget_bytes // max(1, per_image_bytes))
    if N >= 2:
        nb_cap = min(nb_cap, max(1, N // 2))
    nb = 1
    for d in range(1, min(nb_cap, N) + 1):
        if N % d == 0:
            nb = d
    return nb


def irevnet_block_forward(x1, x2, w1_oihw, w2_oihw, w3_oihw, *, batch_block=None):
    """x1, x2: (N, C, H, W) NCHW.  w*: torch layout (Cout, Cin, 3, 3), already
    spectral-normalized.  Returns (x2, y1), y1: (N, out_ch, H, W) in x1.dtype."""
    N, C, H, W = x1.shape
    assert x2.shape == (N, C, H, W)
    L = H * W
    ch_hid = w1_oihw.shape[0]
    cout = w3_oihw.shape[0]
    assert cout == C, "pad == 0 branch requires out_ch == in_ch // 2"

    cp_in = _round_up(C, _SUBLANE)
    cp_hid = _round_up(ch_hid, _SUBLANE)
    cp_out = _round_up(cout, _SUBLANE)
    cp_max = max(cp_in, cp_hid, cp_out)

    # rough per-image VMEM footprint (double-buffered IO + f32 taps + bf16
    # patches + a few activation buffers) used to size the batch block.
    per_image = ((cp_in + 2 * cp_out) * L * 4 * 2
                 + 9 * cp_max * L * (4 + 2)
                 + 4 * cp_max * L * 4)
    if batch_block is None:
        batch_block = _choose_batch_block(N, per_image)
    nb = batch_block
    assert N % nb == 0, "batch_block must divide N"
    nbL = nb * L
    grid = (N // nb,)

    w1f = _flatten_conv_weight(w1_oihw, cp_in, cp_hid)    # (cp_hid, 9*cp_in)
    w2f = _flatten_conv_weight(w2_oihw, cp_hid, cp_hid)   # (cp_hid, 9*cp_hid)
    w3f = _flatten_conv_weight(w3_oihw, cp_hid, cp_out)   # (cp_out, 9*cp_hid)
    masks = jnp.tile(_make_tap_masks(H, W), (1, nb))      # (9, nb*L)

    # channels-major layout: lanes carry batch*spatial (lane-dense loads/stores
    # and one big matmul N axis per layer).
    x1f = x1.reshape(N, C, L)
    if cp_out != C:
        x1f = jnp.pad(x1f, ((0, 0), (0, cp_out - C), (0, 0)))
    x1f = x1f.transpose(1, 0, 2).reshape(cp_out, N * L)
    x2f = x2.reshape(N, C, L)
    if cp_in != C:
        x2f = jnp.pad(x2f, ((0, 0), (0, cp_in - C), (0, 0)))
    x2f = x2f.transpose(1, 0, 2).reshape(cp_in, N * L)

    flops = 2 * N * L * 9 * (cp_hid * cp_in + cp_hid * cp_hid + cp_out * cp_hid)
    bytes_accessed = int((x1f.size + x2f.size) * x1.dtype.itemsize
                         + cp_out * N * L * x1.dtype.itemsize
                         + (w1f.size + w2f.size + w3f.size) * 2
                         + masks.size * 4)
    cost = pl.CostEstimate(flops=int(flops), transcendentals=0,
                           bytes_accessed=bytes_accessed)

    y1 = pl.pallas_call(
        functools.partial(_irevnet_block_kernel, W=W),
        out_shape=jax.ShapeDtypeStruct((cp_out, N * L), x1.dtype),
        grid_spec=pltpu.PrefetchScalarGridSpec(
            num_scalar_prefetch=0,
            grid=grid,
            in_specs=[
                pl.BlockSpec((cp_out, nbL), lambda n: (0, n)),   # x1 (padded C)
                pl.BlockSpec((cp_in, nbL), lambda n: (0, n)),    # x2 (padded C)
                pl.BlockSpec((9, nbL), lambda n: (0, 0)),        # tap masks
                pl.BlockSpec(w1f.shape, lambda n: (0, 0)),
                pl.BlockSpec(w2f.shape, lambda n: (0, 0)),
                pl.BlockSpec(w3f.shape, lambda n: (0, 0)),
            ],
            out_specs=pl.BlockSpec((cp_out, nbL), lambda n: (0, n)),
        ),
        compiler_params=pltpu.CompilerParams(
            dimension_semantics=("parallel",),
            vmem_limit_bytes=32 * 1024 * 1024),
        cost_estimate=cost,
    )(x1f, x2f, masks, w1f, w2f, w3f)

    y1 = (y1.reshape(cp_out, N, L).transpose(1, 0, 2)[:, :cout, :]
            .reshape(N, cout, H, W))
    # x2 is a pure pass-through: return the input array instead of copying it
    # through the kernel (saves its HBM read + write).
    return x2, y1


def spectral_normalize(w_torch_layout):
    """Emulate nn.utils.spectral_norm on a Conv2d weight (Cout, Cin, kh, kw):
    divide by the largest singular value of the (Cout, Cin*kh*kw) matrix."""
    w_mat = w_torch_layout.reshape(w_torch_layout.shape[0], -1)
    sigma = jnp.linalg.svd(w_mat, compute_uv=False)[0]
    return w_torch_layout / sigma


def _ref_forward(x1, x2, w1, w2, w3):
    """Plain-JAX f32 reference (NCHW / OIHW) for verification."""
    def conv(x, w):
        return jax.lax.conv_general_dilated(
            x, w, (1, 1), ((1, 1), (1, 1)),
            dimension_numbers=('NCHW', 'OIHW', 'NCHW'),
            precision=jax.lax.Precision.HIGHEST)
    lrelu = lambda v: jnp.where(v > 0, v, 0.2 * v)
    h = conv(lrelu(x2), w1)
    h = conv(lrelu(h), w2)
    fx2 = conv(lrelu(h), w3)
    return x2, fx2 + x1


if __name__ == "__main__":
    # Module config: in_ch=16, out_ch=8, stride=1, mult=4  ->  pad = 2*8-16 = 0
    N, H, W = 2, 16, 16
    in_ch, out_ch, mult = 16, 8, 4
    C = in_ch // 2               # channels of each stream x1, x2  (= 8)
    ch_hid = out_ch // mult      # bottleneck hidden channels      (= 2)

    key = jax.random.PRNGKey(0)
    k1, k2, kw1, kw2, kw3 = jax.random.split(key, 5)

    # inputs / weights follow the PyTorch NCHW / OIHW conventions
    x1 = jax.random.normal(k1, (N, C, H, W), jnp.float32)
    x2 = jax.random.normal(k2, (N, C, H, W), jnp.float32)
    w1 = spectral_normalize(0.2 * jax.random.normal(kw1, (ch_hid, C, 3, 3), jnp.float32))
    w2 = spectral_normalize(0.2 * jax.random.normal(kw2, (ch_hid, ch_hid, 3, 3), jnp.float32))
    w3 = spectral_normalize(0.2 * jax.random.normal(kw3, (out_ch, ch_hid, 3, 3), jnp.float32))

    x2_out, y1 = irevnet_block_forward(x1, x2, w1, w2, w3)   # auto batch_block
    jax.block_until_ready((x2_out, y1))

    # verify against the plain-JAX reference
    r_x2, r_y1 = _ref_forward(x1, x2, w1, w2, w3)
    assert x2_out.shape == (N, C, H, W) and y1.shape == (N, out_ch, H, W)
    assert float(jnp.max(jnp.abs(x2_out - r_x2))) == 0.0
    # bf16 MXU operands (f32 accumulation) -> loosened tolerance vs f32 reference
    assert float(jnp.max(jnp.abs(y1 - r_y1))) < 2e-2

    # TODO(synk): actnorm=True, the injective-pad (pad != 0) branch and the
    # stride=2 (psi) branch are config-disabled here and not lowered; hidden-
    # channel packing for tiny mult-divided widths (review item) not applied.
    print("KERNEL_OK")
</pallas_src>

<mosaic_0001>
module attributes {stable_mosaic.version = 11 : i64} {
  func.func @_irevnet_block_kernel(%arg0: i32, %arg1: memref<8x256xf32, #tpu.memory_space<vmem>>, %arg2: memref<8x256xf32, #tpu.memory_space<vmem>>, %arg3: memref<9x256xf32, #tpu.memory_space<vmem>>, %arg4: memref<8x72xbf16, #tpu.memory_space<vmem>>, %arg5: memref<8x72xbf16, #tpu.memory_space<vmem>>, %arg6: memref<8x72xbf16, #tpu.memory_space<vmem>>, %arg7: memref<8x256xf32, #tpu.memory_space<vmem>>) attributes {dimension_semantics = [#tpu.dimension_semantics<parallel>], iteration_bounds = array<i64: 2>, scalar_prefetch = 0 : i64, scratch_operands = 0 : i64, tpu.core_type = #tpu.core_type<tc>, window_params = [{transform_indices = @transform_0, window_bounds = array<i64: 8, 256>}, {transform_indices = @transform_1, window_bounds = array<i64: 8, 256>}, {pipeline_mode = #tpu.pipeline_mode<synchronous>, transform_indices = @transform_2, window_bounds = array<i64: 9, 256>}, {pipeline_mode = #tpu.pipeline_mode<synchronous>, transform_indices = @transform_3, window_bounds = array<i64: 8, 72>}, {pipeline_mode = #tpu.pipeline_mode<synchronous>, transform_indices = @transform_4, window_bounds = array<i64: 8, 72>}, {pipeline_mode = #tpu.pipeline_mode<synchronous>, transform_indices = @transform_5, window_bounds = array<i64: 8, 72>}, {transform_indices = @transform_6, window_bounds = array<i64: 8, 256>}]} {
    %c0 = arith.constant 0 : index
    %c0_0 = arith.constant 0 : index
    %0 = vector.load %arg3[%c0, %c0_0] : memref<9x256xf32, #tpu.memory_space<vmem>>, vector<9x256xf32>
    %1 = vector.extract_strided_slice %0 {offsets = [0, 0], sizes = [1, 256], strides = [1, 1]} : vector<9x256xf32> to vector<1x256xf32>
    %2 = vector.extract_strided_slice %0 {offsets = [1, 0], sizes = [1, 256], strides = [1, 1]} : vector<9x256xf32> to vector<1x256xf32>
    %3 = vector.extract_strided_slice %0 {offsets = [2, 0], sizes = [1, 256], strides = [1, 1]} : vector<9x256xf32> to vector<1x256xf32>
    %4 = vector.extract_strided_slice %0 {offsets = [3, 0], sizes = [1, 256], strides = [1, 1]} : vector<9x256xf32> to vector<1x256xf32>
    %5 = vector.extract_strided_slice %0 {offsets = [5, 0], sizes = [1, 256], strides = [1, 1]} : vector<9x256xf32> to vector<1x256xf32>
    %6 = vector.extract_strided_slice %0 {offsets = [6, 0], sizes = [1, 256], strides = [1, 1]} : vector<9x256xf32> to vector<1x256xf32>
    %7 = vector.extract_strided_slice %0 {offsets = [7, 0], sizes = [1, 256], strides = [1, 1]} : vector<9x256xf32> to vector<1x256xf32>
    %8 = vector.extract_strided_slice %0 {offsets = [8, 0], sizes = [1, 256], strides = [1, 1]} : vector<9x256xf32> to vector<1x256xf32>
    %c0_1 = arith.constant 0 : index
    %c0_2 = arith.constant 0 : index
    %9 = vector.load %arg4[%c0_1, %c0_2] : memref<8x72xbf16, #tpu.memory_space<vmem>>, vector<8x72xbf16>
    %c0_3 = arith.constant 0 : index
    %c0_4 = arith.constant 0 : index
    %10 = vector.load %arg5[%c0_3, %c0_4] : memref<8x72xbf16, #tpu.memory_space<vmem>>, vector<8x72xbf16>
    %c0_5 = arith.constant 0 : index
    %c0_6 = arith.constant 0 : index
    %11 = vector.load %arg6[%c0_5, %c0_6] : memref<8x72xbf16, #tpu.memory_space<vmem>>, vector<8x72xbf16>
    %c0_7 = arith.constant 0 : index
    %c0_8 = arith.constant 0 : index
    %12 = vector.load %arg2[%c0_7, %c0_8] : memref<8x256xf32, #tpu.memory_space<vmem>>, vector<8x256xf32>
    %cst = arith.constant 0.000000e+00 : f32
    %13 = vector.broadcast %cst : f32 to vector<8x256xf32>
    %14 = arith.cmpf ogt, %12, %13 : vector<8x256xf32>
    %cst_9 = arith.constant 2.000000e-01 : f32
    %15 = vector.broadcast %cst_9 : f32 to vector<8x256xf32>
    %16 = arith.mulf %15, %12 : vector<8x256xf32>
    %17 = arith.select %14, %12, %16 : vector<8x256xi1>, vector<8x256xf32>
    %c17_i32 = arith.constant 17 : i32
    %18 = tpu.dynamic_rotate %17 by %c17_i32 dim 1 : vector<8x256xf32>, i32 -> vector<8x256xf32>
    %19 = vector.broadcast %1 : vector<1x256xf32> to vector<8x256xf32>
    %20 = arith.mulf %18, %19 : vector<8x256xf32>
    %c16_i32 = arith.constant 16 : i32
    %21 = tpu.dynamic_rotate %17 by %c16_i32 dim 1 : vector<8x256xf32>, i32 -> vector<8x256xf32>
    %22 = vector.broadcast %2 : vector<1x256xf32> to vector<8x256xf32>
    %23 = arith.mulf %21, %22 : vector<8x256xf32>
    %c15_i32 = arith.constant 15 : i32
    %24 = tpu.dynamic_rotate %17 by %c15_i32 dim 1 : vector<8x256xf32>, i32 -> vector<8x256xf32>
    %25 = vector.broadcast %3 : vector<1x256xf32> to vector<8x256xf32>
    %26 = arith.mulf %24, %25 : vector<8x256xf32>
    %c1_i32 = arith.constant 1 : i32
    %27 = tpu.dynamic_rotate %17 by %c1_i32 dim 1 : vector<8x256xf32>, i32 -> vector<8x256xf32>
    %28 = vector.broadcast %4 : vector<1x256xf32> to vector<8x256xf32>
    %29 = arith.mulf %27, %28 : vector<8x256xf32>
    %c255_i32 = arith.constant 255 : i32
    %30 = tpu.dynamic_rotate %17 by %c255_i32 dim 1 : vector<8x256xf32>, i32 -> vector<8x256xf32>
    %31 = vector.broadcast %5 : vector<1x256xf32> to vector<8x256xf32>
    %32 = arith.mulf %30, %31 : vector<8x256xf32>
    %c241_i32 = arith.constant 241 : i32
    %33 = tpu.dynamic_rotate %17 by %c241_i32 dim 1 : vector<8x256xf32>, i32 -> vector<8x256xf32>
    %34 = vector.broadcast %6 : vector<1x256xf32> to vector<8x256xf32>
    %35 = arith.mulf %33, %34 : vector<8x256xf32>
    %c240_i32 = arith.constant 240 : i32
    %36 = tpu.dynamic_rotate %17 by %c240_i32 dim 1 : vector<8x256xf32>, i32 -> vector<8x256xf32>
    %37 = vector.broadcast %7 : vector<1x256xf32> to vector<8x256xf32>
    %38 = arith.mulf %36, %37 : vector<8x256xf32>
    %c239_i32 = arith.constant 239 : i32
    %39 = tpu.dynamic_rotate %17 by %c239_i32 dim 1 : vector<8x256xf32>, i32 -> vector<8x256xf32>
    %40 = vector.broadcast %8 : vector<1x256xf32> to vector<8x256xf32>
    %41 = arith.mulf %39, %40 : vector<8x256xf32>
    %42 = tpu.concatenate %20, %23, %26, %29, %17, %32, %35, %38, %41 in 0 : vector<8x256xf32>, vector<8x256xf32>, vector<8x256xf32>, vector<8x256xf32>, vector<8x256xf32>, vector<8x256xf32>, vector<8x256xf32>, vector<8x256xf32>, vector<8x256xf32> -> vector<72x256xf32>
    %43 = arith.truncf %42 : vector<72x256xf32> to vector<72x256xbf16>
    %cst_10 = arith.constant dense<0.000000e+00> : vector<8x256xf32>
    %44 = tpu.matmul %9, %43, %cst_10 {dimension_numbers = #tpu.dot_dimension_numbers<[1], [0], [0], [1], [0, 0, 1, 1], [], []>} : vector<8x72xbf16>, vector<72x256xbf16>, vector<8x256xf32> -> vector<8x256xf32>
    %cst_11 = arith.constant 0.000000e+00 : f32
    %45 = vector.broadcast %cst_11 : f32 to vector<8x256xf32>
    %46 = arith.cmpf ogt, %44, %45 : vector<8x256xf32>
    %cst_12 = arith.constant 2.000000e-01 : f32
    %47 = vector.broadcast %cst_12 : f32 to vector<8x256xf32>
    %48 = arith.mulf %47, %44 : vector<8x256xf32>
    %49 = arith.select %46, %44, %48 : vector<8x256xi1>, vector<8x256xf32>
    %c17_i32_13 = arith.constant 17 : i32
    %50 = tpu.dynamic_rotate %49 by %c17_i32_13 dim 1 : vector<8x256xf32>, i32 -> vector<8x256xf32>
    %51 = vector.broadcast %1 : vector<1x256xf32> to vector<8x256xf32>
    %52 = arith.mulf %50, %51 : vector<8x256xf32>
    %c16_i32_14 = arith.constant 16 : i32
    %53 = tpu.dynamic_rotate %49 by %c16_i32_14 dim 1 : vector<8x256xf32>, i32 -> vector<8x256xf32>
    %54 = vector.broadcast %2 : vector<1x256xf32> to vector<8x256xf32>
    %55 = arith.mulf %53, %54 : vector<8x256xf32>
    %c15_i32_15 = arith.constant 15 : i32
    %56 = tpu.dynamic_rotate %49 by %c15_i32_15 dim 1 : vector<8x256xf32>, i32 -> vector<8x256xf32>
    %57 = vector.broadcast %3 : vector<1x256xf32> to vector<8x256xf32>
    %58 = arith.mulf %56, %57 : vector<8x256xf32>
    %c1_i32_16 = arith.constant 1 : i32
    %59 = tpu.dynamic_rotate %49 by %c1_i32_16 dim 1 : vector<8x256xf32>, i32 -> vector<8x256xf32>
    %60 = vector.broadcast %4 : vector<1x256xf32> to vector<8x256xf32>
    %61 = arith.mulf %59, %60 : vector<8x256xf32>
    %c255_i32_17 = arith.constant 255 : i32
    %62 = tpu.dynamic_rotate %49 by %c255_i32_17 dim 1 : vector<8x256xf32>, i32 -> vector<8x256xf32>
    %63 = vector.broadcast %5 : vector<1x256xf32> to vector<8x256xf32>
    %64 = arith.mulf %62, %63 : vector<8x256xf32>
    %c241_i32_18 = arith.constant 241 : i32
    %65 = tpu.dynamic_rotate %49 by %c241_i32_18 dim 1 : vector<8x256xf32>, i32 -> vector<8x256xf32>
    %66 = vector.broadcast %6 : vector<1x256xf32> to vector<8x256xf32>
    %67 = arith.mulf %65, %66 : vector<8x256xf32>
    %c240_i32_19 = arith.constant 240 : i32
    %68 = tpu.dynamic_rotate %49 by %c240_i32_19 dim 1 : vector<8x256xf32>, i32 -> vector<8x256xf32>
    %69 = vector.broadcast %7 : vector<1x256xf32> to vector<8x256xf32>
    %70 = arith.mulf %68, %69 : vector<8x256xf32>
    %c239_i32_20 = arith.constant 239 : i32
    %71 = tpu.dynamic_rotate %49 by %c239_i32_20 dim 1 : vector<8x256xf32>, i32 -> vector<8x256xf32>
    %72 = vector.broadcast %8 : vector<1x256xf32> to vector<8x256xf32>
    %73 = arith.mulf %71, %72 : vector<8x256xf32>
    %74 = tpu.concatenate %52, %55, %58, %61, %49, %64, %67, %70, %73 in 0 : vector<8x256xf32>, vector<8x256xf32>, vector<8x256xf32>, vector<8x256xf32>, vector<8x256xf32>, vector<8x256xf32>, vector<8x256xf32>, vector<8x256xf32>, vector<8x256xf32> -> vector<72x256xf32>
    %75 = arith.truncf %74 : vector<72x256xf32> to vector<72x256xbf16>
    %cst_21 = arith.constant dense<0.000000e+00> : vector<8x256xf32>
    %76 = tpu.matmul %10, %75, %cst_21 {dimension_numbers = #tpu.dot_dimension_numbers<[1], [0], [0], [1], [0, 0, 1, 1], [], []>} : vector<8x72xbf16>, vector<72x256xbf16>, vector<8x256xf32> -> vector<8x256xf32>
    %cst_22 = arith.constant 0.000000e+00 : f32
    %77 = vector.broadcast %cst_22 : f32 to vector<8x256xf32>
    %78 = arith.cmpf ogt, %76, %77 : vector<8x256xf32>
    %cst_23 = arith.constant 2.000000e-01 : f32
    %79 = vector.broadcast %cst_23 : f32 to vector<8x256xf32>
    %80 = arith.mulf %79, %76 : vector<8x256xf32>
    %81 = arith.select %78, %76, %80 : vector<8x256xi1>, vector<8x256xf32>
    %c17_i32_24 = arith.constant 17 : i32
    %82 = tpu.dynamic_rotate %81 by %c17_i32_24 dim 1 : vector<8x256xf32>, i32 -> vector<8x256xf32>
    %83 = vector.broadcast %1 : vector<1x256xf32> to vector<8x256xf32>
    %84 = arith.mulf %82, %83 : vector<8x256xf32>
    %c16_i32_25 = arith.constant 16 : i32
    %85 = tpu.dynamic_rotate %81 by %c16_i32_25 dim 1 : vector<8x256xf32>, i32 -> vector<8x256xf32>
    %86 = vector.broadcast %2 : vector<1x256xf32> to vector<8x256xf32>
    %87 = arith.mulf %85, %86 : vector<8x256xf32>
    %c15_i32_26 = arith.constant 15 : i32
    %88 = tpu.dynamic_rotate %81 by %c15_i32_26 dim 1 : vector<8x256xf32>, i32 -> vector<8x256xf32>
    %89 = vector.broadcast %3 : vector<1x256xf32> to vector<8x256xf32>
    %90 = arith.mulf %88, %89 : vector<8x256xf32>
    %c1_i32_27 = arith.constant 1 : i32
    %91 = tpu.dynamic_rotate %81 by %c1_i32_27 dim 1 : vector<8x256xf32>, i32 -> vector<8x256xf32>
    %92 = vector.broadcast %4 : vector<1x256xf32> to vector<8x256xf32>
    %93 = arith.mulf %91, %92 : vector<8x256xf32>
    %c255_i32_28 = arith.constant 255 : i32
    %94 = tpu.dynamic_rotate %81 by %c255_i32_28 dim 1 : vector<8x256xf32>, i32 -> vector<8x256xf32>
    %95 = vector.broadcast %5 : vector<1x256xf32> to vector<8x256xf32>
    %96 = arith.mulf %94, %95 : vector<8x256xf32>
    %c241_i32_29 = arith.constant 241 : i32
    %97 = tpu.dynamic_rotate %81 by %c241_i32_29 dim 1 : vector<8x256xf32>, i32 -> vector<8x256xf32>
    %98 = vector.broadcast %6 : vector<1x256xf32> to vector<8x256xf32>
    %99 = arith.mulf %97, %98 : vector<8x256xf32>
    %c240_i32_30 = arith.constant 240 : i32
    %100 = tpu.dynamic_rotate %81 by %c240_i32_30 dim 1 : vector<8x256xf32>, i32 -> vector<8x256xf32>
    %101 = vector.broadcast %7 : vector<1x256xf32> to vector<8x256xf32>
    %102 = arith.mulf %100, %101 : vector<8x256xf32>
    %c239_i32_31 = arith.constant 239 : i32
    %103 = tpu.dynamic_rotate %81 by %c239_i32_31 dim 1 : vector<8x256xf32>, i32 -> vector<8x256xf32>
    %104 = vector.broadcast %8 : vector<1x256xf32> to vector<8x256xf32>
    %105 = arith.mulf %103, %104 : vector<8x256xf32>
    %106 = tpu.concatenate %84, %87, %90, %93, %81, %96, %99, %102, %105 in 0 : vector<8x256xf32>, vector<8x256xf32>, vector<8x256xf32>, vector<8x256xf32>, vector<8x256xf32>, vector<8x256xf32>, vector<8x256xf32>, vector<8x256xf32>, vector<8x256xf32> -> vector<72x256xf32>
    %107 = arith.truncf %106 : vector<72x256xf32> to vector<72x256xbf16>
    %cst_32 = arith.constant dense<0.000000e+00> : vector<8x256xf32>
    %108 = tpu.matmul %11, %107, %cst_32 {dimension_numbers = #tpu.dot_dimension_numbers<[1], [0], [0], [1], [0, 0, 1, 1], [], []>} : vector<8x72xbf16>, vector<72x256xbf16>, vector<8x256xf32> -> vector<8x256xf32>
    %c0_33 = arith.constant 0 : index
    %c0_34 = arith.constant 0 : index
    %109 = vector.load %arg1[%c0_33, %c0_34] : memref<8x256xf32, #tpu.memory_space<vmem>>, vector<8x256xf32>
    %110 = arith.addf %108, %109 : vector<8x256xf32>
    %c0_35 = arith.constant 0 : index
    %c0_36 = arith.constant 0 : index
    %111 = vector.load %arg7[%c0_35, %c0_36] : memref<8x256xf32, #tpu.memory_space<vmem>>, vector<8x256xf32>
    tpu.vector_store %arg7[%c0_35, %c0_36], %110 {strides = array<i32>} : memref<8x256xf32, #tpu.memory_space<vmem>>, vector<8x256xf32>,
    return
  }
  func.func @transform_0(%arg0: i32) -> (i32, i32) {
    %c0_i32 = arith.constant 0 : i32
    %c0_i32_0 = arith.constant 0 : i32
    return %c0_i32, %arg0 : i32, i32
  }
  func.func @transform_1(%arg0: i32) -> (i32, i32) {
    %c0_i32 = arith.constant 0 : i32
    %c0_i32_0 = arith.constant 0 : i32
    return %c0_i32, %arg0 : i32, i32
  }
  func.func @transform_2(%arg0: i32) -> (i32, i32) {
    %c0_i32 = arith.constant 0 : i32
    %c0_i32_0 = arith.constant 0 : i32
    %c0_i32_1 = arith.constant 0 : i32
    return %c0_i32, %c0_i32_0 : i32, i32
  }
  func.func @transform_3(%arg0: i32) -> (i32, i32) {
    %c0_i32 = arith.constant 0 : i32
    %c0_i32_0 = arith.constant 0 : i32
    %c0_i32_1 = arith.constant 0 : i32
    return %c0_i32, %c0_i32_0 : i32, i32
  }
  func.func @transform_4(%arg0: i32) -> (i32, i32) {
    %c0_i32 = arith.constant 0 : i32
    %c0_i32_0 = arith.constant 0 : i32
    %c0_i32_1 = arith.constant 0 : i32
    return %c0_i32, %c0_i32_0 : i32, i32
  }
  func.func @transform_5(%arg0: i32) -> (i32, i32) {
    %c0_i32 = arith.constant 0 : i32
    %c0_i32_0 = arith.constant 0 : i32
    %c0_i32_1 = arith.constant 0 : i32
    return %c0_i32, %c0_i32_0 : i32, i32
  }
  func.func @transform_6(%arg0: i32) -> (i32, i32) {
    %c0_i32 = arith.constant 0 : i32
    %c0_i32_0 = arith.constant 0 : i32
    return %c0_i32, %arg0 : i32, i32
  }
}

</mosaic_0001>

<llo_original>
// kernel: tpu_custom_call.1
$region0: #{tpu_custom_call.1}
  #allocation0 [shape = 'u32[]', space=smem, size = 0x4, offset = 0x4, fixed_abs, tag = 'smem constant byte address 0x4 - core index']
  #allocation1 [shape = 'u32[72,128]{1,0:T(1,128)}', space=vmem, size = 0x9000, scoped, tag = 'internal scratch']
  %s0 = inlined_call_operand.hbm [shape: f32[8,512], index: 0, kind: input, shape index: {}]
  %s1 = inlined_call_operand.hbm [shape: f32[8,512], index: 1, kind: input, shape index: {}]
  %s2 = inlined_call_operand.hbm [shape: f32[9,256], index: 2, kind: input, shape index: {}]
  %s3 = inlined_call_operand.hbm [shape: bf16[8,72], index: 3, kind: input, shape index: {}]
  %s4 = inlined_call_operand.hbm [shape: bf16[8,72], index: 4, kind: input, shape index: {}]
  %s5 = inlined_call_operand.vmem [shape: bf16[8,72], index: 5, kind: input, shape index: {}]
  %s6 = inlined_call_operand.hbm [shape: f32[8,512], index: 6, kind: output, shape index: {}]
  %s7 = sld [smem:[#allocation0]]
  $region77: #{tpu_custom_call.1} parent=0
    _
  %s9 = ssub.s32 1, %s7
  %s10 = scalar_select 0, %s9, %s7
  $region1: #{tpu_custom_call.1} parent=0
    #allocation2 [shape = 'u8[16384]{0}', space=vmem, size = 0x4000, scoped, tag = 'input window, operand 0']
    #allocation3 [shape = 's32[2]{0}', space=sflag, size = 0x8, scoped, tag = 'scoped memory for tpu_custom_call.1']
    #allocation4 [shape = 's32[2]{0}', space=sflag, size = 0x8, scoped, tag = 'scoped memory for tpu_custom_call.1']
    #allocation5 [shape = 'u8[16384]{0}', space=vmem, size = 0x4000, scoped, tag = 'input window, operand 1']
    #allocation6 [shape = 's32[2]{0}', space=sflag, size = 0x8, scoped, tag = 'scoped memory for tpu_custom_call.1']
    #allocation7 [shape = 'u8[16384]{0}', space=vmem, size = 0x4000, scoped, tag = 'input window, operand 2, single buffered']
    #allocation8 [shape = 'u8[2048]{0}', space=vmem, size = 0x800, scoped, tag = 'input window, operand 3, single buffered']
    #allocation9 [shape = 's32[1]{0}', space=sflag, size = 0x4, scoped, tag = 'scoped memory for tpu_custom_call.1']
    #allocation10 [shape = 'u8[2048]{0}', space=vmem, size = 0x800, scoped, tag = 'input window, operand 4, single buffered']
    #allocation11 [shape = 'u8[16384]{0}', space=vmem, size = 0x4000, scoped, tag = 'output window, operand 0']
    %11 = vsyncpa [#allocation3], 0
    %s12 = scalar_lea.sflag [#allocation3], 1
    %13 = vsyncpa %s12, 0
    %14 = vsyncpa [#allocation6], 0
    %s15 = scalar_lea.sflag [#allocation6], 1
    %16 = vsyncpa %s15, 0
    %17 = vsyncpa [#allocation9], 0
    %18 = vsyncpa [#allocation4], 0
    %s19 = scalar_lea.sflag [#allocation4], 1
    %20 = vsyncpa %s19, 0
    loop: start=0, step=1, limit=4
    $region2: #{tpu_custom_call.1} parent=1 // loop_pre_header
      _
    $region3: #{tpu_custom_call.1} parent=1 // loop_header
      %s22 = sphi 0, %s26
      %p23 = scmp.ge.s32.totalorder %s22, 4
      %s32 = sphi 0, %s34
      %s35 = sphi 0, %s32
      %s36 = sphi 0, %s35
      %s52 = sphi 0, %s36
      %s58 = sphi 0, %s60
      %s61 = sphi 0, %s58
      %s62 = sphi 0, %s61
      %s78 = sphi 0, %s62
      %s82 = sphi 0, %s82
      %s84 = sphi 0, %s82
      %s85 = sphi 0, %s84
      %s99 = sphi 0, %s85
      %s103 = sphi 0, %s103
      %s105 = sphi 0, %s103
      %s106 = sphi 0, %s105
      %s120 = sphi 0, %s106
      %s124 = sphi 0, %s124
      %s126 = sphi 0, %s124
      %s127 = sphi 0, %s126
      %s141 = sphi 0, %s127
      %s145 = sphi 0, %s145
      %s147 = sphi 0, %s145
      %s148 = sphi 0, %s147
      %s162 = sphi 0, %s148
      %s168 = sphi 0, %s170
      %s171 = sphi 0, %s168
      %s172 = sphi 0, %s171
      %s188 = sphi 0, %s172
    $region4: #{tpu_custom_call.1} parent=1 // loop_header_branch
      %25 = sbr.rel (%p23) target = $region8
    $region5: #{tpu_custom_call.1} parent=1 // loop_body
      %s27 = ssub.s32 %s22, 1
      %s28 = ssub.s32 %s22, 2
      %s29 = sadd.s32 %s22, 1
      %s30 = ssub.s32 %s22, %s29
      %p31 = scmp.eq.s32.totalorder %s30, 0
      %s33 = sadd.s32 %s32, 1
      %s34 = scalar_select %p31, %s32, %s33
      %p37 = pneg %p31
      %p38 = scmp.eq.s32.totalorder %s22, 1
      %p39 = por %p37, %p38
      %p40 = scmp.ne.s32.totalorder %s32, %s35
      %p41 = scmp.eq.s32.totalorder %s22, 0
      %p42 = por %p40, %p41
      %p43 = scmp.ne.s32.totalorder %s32, %s35
      %p44 = scmp.eq.s32.totalorder %s27, 1
      %p45 = por %p43, %p44
      %p46 = scmp.ne.s32.totalorder %s35, %s36
      %p47 = scmp.eq.s32.totalorder %s27, 0
      %p48 = por %p46, %p47
      %p49 = scmp.ne.s32.totalorder %s35, %s36
      %p50 = scmp.eq.s32.totalorder %s28, 1
      %p51 = por %p49, %p50
      %p53 = scmp.ne.s32.totalorder %s36, %s52
      %p54 = scmp.eq.s32.totalorder %s28, 0
      %p55 = por %p53, %p54
      %s56 = ssub.s32 %s22, %s29
      %p57 = scmp.eq.s32.totalorder %s56, 0
      %s59 = sadd.s32 %s58, 1
      %s60 = scalar_select %p57, %s58, %s59
      %p63 = pneg %p57
      %p64 = scmp.eq.s32.totalorder %s22, 1
      %p65 = por %p63, %p64
      %p66 = scmp.ne.s32.totalorder %s58, %s61
      %p67 = scmp.eq.s32.totalorder %s22, 0
      %p68 = por %p66, %p67
      %p69 = scmp.ne.s32.totalorder %s58, %s61
      %p70 = scmp.eq.s32.totalorder %s27, 1
      %p71 = por %p69, %p70
      %p72 = scmp.ne.s32.totalorder %s61, %s62
      %p73 = scmp.eq.s32.totalorder %s27, 0
      %p74 = por %p72, %p73
      %p75 = scmp.ne.s32.totalorder %s61, %s62
      %p76 = scmp.eq.s32.totalorder %s28, 1
      %p77 = por %p75, %p76
      %p79 = scmp.ne.s32.totalorder %s62, %s78
      %p80 = scmp.eq.s32.totalorder %s28, 0
      %p81 = por %p79, %p80
      %s83 = sadd.s32 %s82, 1
      %p86 = scmp.eq.s32.totalorder %s22, 1
      %p87 = scmp.ne.s32.totalorder %s82, %s84
      %p88 = scmp.eq.s32.totalorder %s22, 0
      %p89 = por %p87, %p88
      %p90 = scmp.ne.s32.totalorder %s82, %s84
      %p91 = scmp.eq.s32.totalorder %s27, 1
      %p92 = por %p90, %p91
      %p93 = scmp.ne.s32.totalorder %s84, %s85
      %p94 = scmp.eq.s32.totalorder %s27, 0
      %p95 = por %p93, %p94
      %p96 = scmp.ne.s32.totalorder %s84, %s85
      %p97 = scmp.eq.s32.totalorder %s28, 1
      %p98 = por %p96, %p97
      %p100 = scmp.ne.s32.totalorder %s85, %s99
      %p101 = scmp.eq.s32.totalorder %s28, 0
      %p102 = por %p100, %p101
      %s104 = sadd.s32 %s103, 1
      %p107 = scmp.eq.s32.totalorder %s22, 1
      %p108 = scmp.ne.s32.totalorder %s103, %s105
      %p109 = scmp.eq.s32.totalorder %s22, 0
      %p110 = por %p108, %p109
      %p111 = scmp.ne.s32.totalorder %s103, %s105
      %p112 = scmp.eq.s32.totalorder %s27, 1
      %p113 = por %p111, %p112
      %p114 = scmp.ne.s32.totalorder %s105, %s106
      %p115 = scmp.eq.s32.totalorder %s27, 0
      %p116 = por %p114, %p115
      %p117 = scmp.ne.s32.totalorder %s105, %s106
      %p118 = scmp.eq.s32.totalorder %s28, 1
      %p119 = por %p117, %p118
      %p121 = scmp.ne.s32.totalorder %s106, %s120
      %p122 = scmp.eq.s32.totalorder %s28, 0
      %p123 = por %p121, %p122
      %s125 = sadd.s32 %s124, 1
      %p128 = scmp.eq.s32.totalorder %s22, 1
      %p129 = scmp.ne.s32.totalorder %s124, %s126
      %p130 = scmp.eq.s32.totalorder %s22, 0
      %p131 = por %p129, %p130
      %p132 = scmp.ne.s32.totalorder %s124, %s126
      %p133 = scmp.eq.s32.totalorder %s27, 1
      %p134 = por %p132, %p133
      %p135 = scmp.ne.s32.totalorder %s126, %s127
      %p136 = scmp.eq.s32.totalorder %s27, 0
      %p137 = por %p135, %p136
      %p138 = scmp.ne.s32.totalorder %s126, %s127
      %p139 = scmp.eq.s32.totalorder %s28, 1
      %p140 = por %p138, %p139
      %p142 = scmp.ne.s32.totalorder %s127, %s141
      %p143 = scmp.eq.s32.totalorder %s28, 0
      %p144 = por %p142, %p143
      %s146 = sadd.s32 %s145, 1
      %p149 = scmp.eq.s32.totalorder %s22, 1
      %p150 = scmp.ne.s32.totalorder %s145, %s147
      %p151 = scmp.eq.s32.totalorder %s22, 0
      %p152 = por %p150, %p151
      %p153 = scmp.ne.s32.totalorder %s145, %s147
      %p154 = scmp.eq.s32.totalorder %s27, 1
      %p155 = por %p153, %p154
      %p156 = scmp.ne.s32.totalorder %s147, %s148
      %p157 = scmp.eq.s32.totalorder %s27, 0
      %p158 = por %p156, %p157
      %p159 = scmp.ne.s32.totalorder %s147, %s148
      %p160 = scmp.eq.s32.totalorder %s28, 1
      %p161 = por %p159, %p160
      %p163 = scmp.ne.s32.totalorder %s148, %s162
      %p164 = scmp.eq.s32.totalorder %s28, 0
      %p165 = por %p163, %p164
      %s166 = ssub.s32 %s22, %s29
      %p167 = scmp.eq.s32.totalorder %s166, 0
      %s169 = sadd.s32 %s168, 1
      %s170 = scalar_select %p167, %s168, %s169
      %p173 = pneg %p167
      %p174 = scmp.eq.s32.totalorder %s22, 1
      %p175 = por %p173, %p174
      %p176 = scmp.ne.s32.totalorder %s168, %s171
      %p177 = scmp.eq.s32.totalorder %s22, 0
      %p178 = por %p176, %p177
      %p179 = scmp.ne.s32.totalorder %s168, %s171
      %p180 = scmp.eq.s32.totalorder %s27, 1
      %p181 = por %p179, %p180
      %p182 = scmp.ne.s32.totalorder %s171, %s172
      %p183 = scmp.eq.s32.totalorder %s27, 0
      %p184 = por %p182, %p183
      %p185 = scmp.ne.s32.totalorder %s171, %s172
      %p186 = scmp.eq.s32.totalorder %s28, 1
      %p187 = por %p185, %p186
      %p189 = scmp.ne.s32.totalorder %s172, %s188
      %p190 = scmp.eq.s32.totalorder %s28, 0
      %p191 = por %p189, %p190
      %p192 = scmp.le.s32.totalorder 1, %s22
      %p193 = scmp.lt.s32.totalorder %s22, 3
      %p194 = pnand %p192, %p193
      %p195 = pneg %p194
      // Predicated region
      $region9: #{tpu_custom_call.1} parent=5 // pred_check
        _
      $region10: #{tpu_custom_call.1} parent=5 // pred_check_branch
        %197 = sbr.rel (%p194) target = $region12
      $region11: #{tpu_custom_call.1} parent=5 // pred_region
        %s198 = ssub.s32 %s22, 1
        // Predicated region
        $region13: #{tpu_custom_call.1} parent=11 // pred_check
          %p199 = pneg %p95
        $region14: #{tpu_custom_call.1} parent=11 // pred_check_branch
          %201 = sbr.rel (%p199) target = $region16
        $region15: #{tpu_custom_call.1} parent=11 // pred_region
          %203 = vsyncadd [#allocation6], 0
          %s204 = sshll.u32 %s2, 4
          %s205 = int_to_ptr.hbm [resolvable:$true] %s204
          %s206 = sshll.u32 [#allocation7], 4
          %s207 = int_to_ptr.vmem [resolvable:$true] %s206
          %212 = dma.hbm_to_vmem [thread:$0]  %s205, 512, %s207, [#allocation6], 256, 256, 16
        $region16: #{tpu_custom_call.1} parent=11 // pred_fallthru
          _
        // Predicated region
        $region17: #{tpu_custom_call.1} parent=11 // pred_check
          %p213 = pneg %p116
        $region18: #{tpu_custom_call.1} parent=11 // pred_check_branch
          %215 = sbr.rel (%p213) target = $region20
        $region19: #{tpu_custom_call.1} parent=11 // pred_region
          %217 = vsyncadd [#allocation9], 0
          %s219 = sshll.u32 %s3, 4
          %s220 = int_to_ptr.hbm [resolvable:$true] %s219
          %s221 = sshll.u32 [#allocation8], 4
          %s222 = int_to_ptr.vmem [resolvable:$true] %s221
          %224 = dma.hbm_to_vmem [thread:$0]  %s220, 64, %s222, [#allocation9]
        $region20: #{tpu_custom_call.1} parent=11 // pred_fallthru
          _
        // Predicated region
        $region21: #{tpu_custom_call.1} parent=11 // pred_check
          %p225 = pneg %p137
        $region22: #{tpu_custom_call.1} parent=11 // pred_check_branch
          %227 = sbr.rel (%p225) target = $region24
        $region23: #{tpu_custom_call.1} parent=11 // pred_region
          %229 = vsyncadd [#allocation9], 0
          %s231 = sshll.u32 %s4, 4
          %s232 = int_to_ptr.hbm [resolvable:$true] %s231
          %s233 = sshll.u32 [#allocation10], 4
          %s234 = int_to_ptr.vmem [resolvable:$true] %s233
          %236 = dma.hbm_to_vmem [thread:$0]  %s232, 64, %s234, [#allocation9]
        $region24: #{tpu_custom_call.1} parent=11 // pred_fallthru
          _
        // Predicated region
        $region25: #{tpu_custom_call.1} parent=11 // pred_check
          %p237 = pneg %p158
        $region26: #{tpu_custom_call.1} parent=11 // pred_check_branch
          %239 = sbr.rel (%p237) target = $region28
        $region27: #{tpu_custom_call.1} parent=11 // pred_region
          _
        $region28: #{tpu_custom_call.1} parent=11 // pred_fallthru
          _
      $region12: #{tpu_custom_call.1} parent=5 // pred_fallthru
        _
      %p240 = scmp.lt.s32.totalorder %s22, 2
      // Predicated region
      $region29: #{tpu_custom_call.1} parent=5 // pred_check
        %p241 = pneg %p240
      $region30: #{tpu_custom_call.1} parent=5 // pred_check_branch
        %243 = sbr.rel (%p241) target = $region32
      $region31: #{tpu_custom_call.1} parent=5 // pred_region
        // Predicated region
        $region33: #{tpu_custom_call.1} parent=31 // pred_check
          %p244 = pneg %p42
        $region34: #{tpu_custom_call.1} parent=31 // pred_check_branch
          %246 = sbr.rel (%p244) target = $region36
        $region35: #{tpu_custom_call.1} parent=31 // pred_region
          %s247 = sand.u32 %s32, 1
          %s248 = scalar_lea.sflag [#allocation3], %s247
          %s249 = sand.u32 %s32, 1
          %s250 = smul.addr %s249, 16
          %s251 = scalar_lea.vmem [#allocation2], %s250
          %s252 = smul.u32 2, %s22
          %254 = vsyncadd %s248, 0
          %s255 = smul.addr %s252, 8
          %s256 = scalar_lea.hbm %s0, %s255
          %s258 = sshll.u32 %s256, 4
          %s259 = int_to_ptr.hbm [resolvable:$true] %s258
          %s260 = sshll.u32 %s251, 4
          %s261 = int_to_ptr.vmem [resolvable:$true] %s260
          %263 = dma.hbm_to_vmem [thread:$0]  %s259, 256, %s261, %s248
        $region36: #{tpu_custom_call.1} parent=31 // pred_fallthru
          _
        // Predicated region
        $region37: #{tpu_custom_call.1} parent=31 // pred_check
          %p264 = pneg %p68
        $region38: #{tpu_custom_call.1} parent=31 // pred_check_branch
          %266 = sbr.rel (%p264) target = $region40
        $region39: #{tpu_custom_call.1} parent=31 // pred_region
          %s267 = sand.u32 %s22, 1
          %s268 = scalar_lea.sflag [#allocation6], %s267
          %s269 = sand.u32 %s58, 1
          %s270 = smul.addr %s269, 16
          %s271 = scalar_lea.vmem [#allocation5], %s270
          %s272 = smul.u32 2, %s22
          %274 = vsyncadd %s268, 0
          %s275 = smul.addr %s272, 8
          %s276 = scalar_lea.hbm %s1, %s275
          %s278 = sshll.u32 %s276, 4
          %s279 = int_to_ptr.hbm [resolvable:$true] %s278
          %s280 = sshll.u32 %s271, 4
          %s281 = int_to_ptr.vmem [resolvable:$true] %s280
          %283 = dma.hbm_to_vmem [thread:$0]  %s279, 256, %s281, %s268
        $region40: #{tpu_custom_call.1} parent=31 // pred_fallthru
          _
      $region32: #{tpu_custom_call.1} parent=5 // pred_fallthru
        _
      %p284 = scmp.le.s32.totalorder 1, %s22
      %p285 = scmp.lt.s32.totalorder %s22, 3
      %p286 = pnand %p284, %p285
      %p287 = pneg %p286
      // Predicated region
      $region41: #{tpu_custom_call.1} parent=5 // pred_check
        _
      $region42: #{tpu_custom_call.1} parent=5 // pred_check_branch
        %289 = sbr.rel (%p286) target = $region44
      $region43: #{tpu_custom_call.1} parent=5 // pred_region
        %s290 = ssub.s32 %s22, 1
        %s291 = sand.u32 %s35, 1
        %s292 = scalar_lea.sflag [#allocation3], %s291
        %s293 = sand.u32 %s35, 1
        %s294 = smul.addr %s293, 16
        %s295 = scalar_lea.vmem [#allocation2], %s294
        // Predicated region
        $region45: #{tpu_custom_call.1} parent=43 // pred_check
          %p296 = pneg %p48
        $region46: #{tpu_custom_call.1} parent=43 // pred_check_branch
          %298 = sbr.rel (%p296) target = $region48
        $region47: #{tpu_custom_call.1} parent=43 // pred_region
          %300 = dma.done %s292, 256
        $region48: #{tpu_custom_call.1} parent=43 // pred_fallthru
          _
        %s301 = sand.u32 %s27, 1
        %s302 = scalar_lea.sflag [#allocation6], %s301
        %s303 = sand.u32 %s61, 1
        %s304 = smul.addr %s303, 16
        %s305 = scalar_lea.vmem [#allocation5], %s304
        // Predicated region
        $region49: #{tpu_custom_call.1} parent=43 // pred_check
          %p306 = pneg %p74
        $region50: #{tpu_custom_call.1} parent=43 // pred_check_branch
          %308 = sbr.rel (%p306) target = $region52
        $region51: #{tpu_custom_call.1} parent=43 // pred_region
          %310 = dma.done %s302, 256
        $region52: #{tpu_custom_call.1} parent=43 // pred_fallthru
          _
        // Predicated region
        $region53: #{tpu_custom_call.1} parent=43 // pred_check
          %p311 = pneg %p95
        $region54: #{tpu_custom_call.1} parent=43 // pred_check_branch
          %313 = sbr.rel (%p311) target = $region56
        $region55: #{tpu_custom_call.1} parent=43 // pred_region
          %315 = dma.done [#allocation6], 512
        $region56: #{tpu_custom_call.1} parent=43 // pred_fallthru
          _
        // Predicated region
        $region57: #{tpu_custom_call.1} parent=43 // pred_check
          %p316 = pneg %p116
        $region58: #{tpu_custom_call.1} parent=43 // pred_check_branch
          %318 = sbr.rel (%p316) target = $region60
        $region59: #{tpu_custom_call.1} parent=43 // pred_region
          %320 = dma.done [#allocation9], 64
        $region60: #{tpu_custom_call.1} parent=43 // pred_fallthru
          _
        // Predicated region
        $region61: #{tpu_custom_call.1} parent=43 // pred_check
          %p321 = pneg %p137
        $region62: #{tpu_custom_call.1} parent=43 // pred_check_branch
          %323 = sbr.rel (%p321) target = $region64
        $region63: #{tpu_custom_call.1} parent=43 // pred_region
          %325 = dma.done [#allocation9], 64
        $region64: #{tpu_custom_call.1} parent=43 // pred_fallthru
          _
        %s326 = sand.u32 %s35, 1
        %s327 = scalar_lea.sflag [#allocation3], %s326
        %s328 = sand.u32 %s35, 1
        %s329 = smul.addr %s328, 16
        %s330 = scalar_lea.vmem [#allocation2], %s329
        %p331 = pneg %p48
        %p332 = pneg %p45
        %s333 = sand.u32 %s27, 1
        %s334 = scalar_lea.sflag [#allocation6], %s333
        %s335 = sand.u32 %s61, 1
        %s336 = smul.addr %s335, 16
        %s337 = scalar_lea.vmem [#allocation5], %s336
        %p338 = pneg %p74
        %p339 = pneg %p71
        %p340 = pneg %p95
        %p341 = pneg %p92
        %p342 = pneg %p116
        %p343 = pneg %p113
        %p344 = pneg %p137
        %p345 = pneg %p134
        %p346 = pneg %p158
        %p347 = pneg %p155
        %p348 = pneg %p184
        %p349 = pneg %p181
        %s350 = sand.u32 %s171, 1
        %s351 = scalar_lea.sflag [#allocation4], %s350
        %s352 = sand.u32 %s171, 1
        %s353 = smul.addr %s352, 16
        %s354 = scalar_lea.vmem [#allocation11], %s353
        %s355 = smul.u32 2, %s27
        %s356 = smul.u32 2, %s27
        %s357 = smul.u32 2, %s27
        %v359 = vld [vmem:[#allocation7] sm:$0xff]
        %v360 = vld [vmem:[#allocation7 + $0x8] sm:$0xff]
        %v361 = vld [vmem:[#allocation7 + $0x10] sm:$0x1]
        %v362 = vld [vmem:[#allocation7 + $0x18] sm:$0x1]
        %v363 = vld [vmem:[#allocation8] sm:$0xf]
        %v364 = vld [vmem:[#allocation10] sm:$0xf]
        %v365 = vld [vmem:[%s5] sm:$0xf]
        %v366 = vld [vmem:[%s305] sm:$0xff]
        %v367 = vld [vmem:[%s305 + $0x8] sm:$0xff]
        %vm368 = vcmp.gt.f32.partialorder %v366, 0.0
        %vm369 = vcmp.gt.f32.partialorder %v367, 0.0
        %v370 = vmul.f32 %v366, 0.2
        %v371 = vmul.f32 %v367, 0.2
        %v372 = vsel %vm368, %v366, %v370
        %v373 = vsel %vm369, %v367, %v371
        %374 = vrot.lane.b32.xlu0 %v372, 17
        %v375 = vpop.permute.xlu0 %374
        %376 = vrot.lane.b32.xlu0 %v373, 17
        %v377 = vpop.permute.xlu0 %376
        %v378 = vlaneseq
        %v379 = vand.u32 %v378, 127
        %vm380 = vcmp.lt.s32.totalorder %v379, 17
        %v381 = vsel %vm380, %v375, %v377
        %v382 = vsel %vm380, %v377, %v375
        %v383 = vperm.slane %v359, 0
        %v384 = vperm.slane %v360, 0
        %v385 = vmul.f32 %v382, %v383
        %v386 = vmul.f32 %v381, %v384
        %387 = vrot.lane.b32.xlu0 %v372, 16
        %v388 = vpop.permute.xlu0 %387
        %389 = vrot.lane.b32.xlu0 %v373, 16
        %v390 = vpop.permute.xlu0 %389
        %vm391 = vcmp.lt.s32.totalorder %v379, 16
        %v392 = vsel %vm391, %v388, %v390
        %v393 = vsel %vm391, %v390, %v388
        %v394 = vperm.slane %v359, 1
        %v395 = vperm.slane %v360, 1
        %v396 = vmul.f32 %v393, %v394
        %v397 = vmul.f32 %v392, %v395
        %398 = vrot.lane.b32.xlu0 %v372, 15
        %v399 = vpop.permute.xlu0 %398
        %400 = vrot.lane.b32.xlu0 %v373, 15
        %v401 = vpop.permute.xlu0 %400
        %vm402 = vcmp.lt.s32.totalorder %v379, 15
        %v403 = vsel %vm402, %v399, %v401
        %v404 = vsel %vm402, %v401, %v399
        %v405 = vperm.slane %v359, 2
        %v406 = vperm.slane %v360, 2
        %v407 = vmul.f32 %v404, %v405
        %v408 = vmul.f32 %v403, %v406
        %409 = vrot.lane.b32.xlu0 %v372, 1
        %v410 = vpop.permute.xlu0 %409
        %411 = vrot.lane.b32.xlu0 %v373, 1
        %v412 = vpop.permute.xlu0 %411
        %vm413 = vcmp.lt.s32.totalorder %v379, 1
        %v414 = vsel %vm413, %v410, %v412
        %v415 = vsel %vm413, %v412, %v410
        %v416 = vperm.slane %v359, 3
        %v417 = vperm.slane %v360, 3
        %v418 = vmul.f32 %v415, %v416
        %v419 = vmul.f32 %v414, %v417
        %420 = vrot.lane.b32.xlu0 %v372, 127
        %v421 = vpop.permute.xlu0 %420
        %422 = vrot.lane.b32.xlu0 %v373, 127
        %v423 = vpop.permute.xlu0 %422
        %vm424 = vcmp.lt.s32.totalorder %v379, 127
        %v425 = vsel %vm424, %v421, %v423
        %v426 = vsel %vm424, %v423, %v421
        %v427 = vperm.slane %v359, 5
        %v428 = vperm.slane %v360, 5
        %v429 = vmul.f32 %v425, %v427
        %v430 = vmul.f32 %v426, %v428
        %431 = vrot.lane.b32.xlu0 %v372, 113
        %v432 = vpop.permute.xlu0 %431
        %433 = vrot.lane.b32.xlu0 %v373, 113
        %v434 = vpop.permute.xlu0 %433
        %vm435 = vcmp.lt.s32.totalorder %v379, 113
        %v436 = vsel %vm435, %v432, %v434
        %v437 = vsel %vm435, %v434, %v432
        %v438 = vperm.slane %v359, 6
        %v439 = vperm.slane %v360, 6
        %v440 = vmul.f32 %v436, %v438
        %v441 = vmul.f32 %v437, %v439
        %442 = vrot.lane.b32.xlu0 %v372, 112
        %v443 = vpop.permute.xlu0 %442
        %444 = vrot.lane.b32.xlu0 %v373, 112
        %v445 = vpop.permute.xlu0 %444
        %vm446 = vcmp.lt.s32.totalorder %v379, 112
        %v447 = vsel %vm446, %v443, %v445
        %v448 = vsel %vm446, %v445, %v443
        %v449 = vperm.slane %v359, 7
        %v450 = vperm.slane %v360, 7
        %v451 = vmul.f32 %v447, %v449
        %v452 = vmul.f32 %v448, %v450
        %453 = vrot.lane.b32.xlu0 %v372, 111
        %v454 = vpop.permute.xlu0 %453
        %455 = vrot.lane.b32.xlu0 %v373, 111
        %v456 = vpop.permute.xlu0 %455
        %vm457 = vcmp.lt.s32.totalorder %v379, 111
        %v458 = vsel %vm457, %v454, %v456
        %v459 = vsel %vm457, %v456, %v454
        %v460 = vperm.slane %v361, 0
        %v461 = vperm.slane %v362, 0
        %v462 = vmul.f32 %v458, %v460
        %v463 = vmul.f32 %v459, %v461
        %v464 = vpack.c.bf16 %v396, %v385
        %v465 = vpack.c.bf16 %v397, %v386
        %v466 = vpack.c.bf16 %v418, %v407
        %v467 = vpack.c.bf16 %v419, %v408
        %v468 = vpack.c.bf16 %v429, %v372
        %v469 = vpack.c.bf16 %v430, %v373
        %v470 = vpack.c.bf16 %v451, %v440
        %v471 = vpack.c.bf16 %v452, %v441
        %v472 = vpack.c.bf16 %v462, %v462
        %v473 = vpack.c.bf16 %v463, %v463
        %vm474 = vcmask 588800
        %v476 = vsel %vm474, %v363, 0
        %vm478 = vcmask 1043456
        %v480 = vsel %vm478, %v472, 0
        %v483 = vsel %vm478, %v473, 0
        %485 = vmatpush.bf16.msra.mxu0 0
        %486 = vmatpush.bf16.msra.mxu0 0
        %487 = vmatpush.bf16.msra.mxu0 0
        %488 = vmatpush.bf16.msra.mxu0 %v480
        %489 = vmatpush.bf16.msra.mxu0 %v470
        %490 = vmatpush.bf16.msra.mxu0 %v468
        %491 = vmatpush.bf16.msra.mxu0 %v466
        %492 = vmatpush.bf16.msra.mxu0 %v464
        %493 = vmatmul.bf16.gmra.mxu0 %v476
        %v494 = vpop.f32.mrf.mxu0
        %v495 = vadd.f32 0.0, %v494
        %v496 = vpop.f32.mrf.mxu0
        %497 = vdwg.mxu0
        %498 = vmatpush.bf16.msra.mxu0 0
        %499 = vmatpush.bf16.msra.mxu0 0
        %500 = vmatpush.bf16.msra.mxu0 0
        %501 = vmatpush.bf16.msra.mxu0 %v483
        %502 = vmatpush.bf16.msra.mxu0 %v471
        %503 = vmatpush.bf16.msra.mxu0 %v469
        %504 = vmatpush.bf16.msra.mxu0 %v467
        %505 = vmatpush.bf16.msra.mxu0 %v465
        %506 = vmatmul.bf16.gmra.mxu0 %v476
        %v507 = vpop.f32.mrf.mxu0
        %v508 = vadd.f32 0.0, %v507
        %v509 = vpop.f32.mrf.mxu0
        %510 = vdwg.mxu0
        %vm511 = vcmp.gt.f32.partialorder %v495, 0.0
        %vm512 = vcmp.gt.f32.partialorder %v508, 0.0
        %v513 = vmul.f32 %v495, 0.2
        %v514 = vmul.f32 %v508, 0.2
        %v515 = vsel %vm511, %v495, %v513
        %v516 = vsel %vm512, %v508, %v514
        %517 = vrot.lane.b32.xlu0 %v515, 17
        %v518 = vpop.permute.xlu0 %517
        %519 = vrot.lane.b32.xlu0 %v516, 17
        %v520 = vpop.permute.xlu0 %519
        %v521 = vsel %vm380, %v518, %v520
        %v522 = vsel %vm380, %v520, %v518
        %v523 = vmul.f32 %v522, %v383
        %v524 = vmul.f32 %v521, %v384
        %525 = vrot.lane.b32.xlu0 %v515, 16
        %v526 = vpop.permute.xlu0 %525
        %527 = vrot.lane.b32.xlu0 %v516, 16
        %v528 = vpop.permute.xlu0 %527
        %v529 = vsel %vm391, %v526, %v528
        %v530 = vsel %vm391, %v528, %v526
        %v531 = vmul.f32 %v530, %v394
        %v532 = vmul.f32 %v529, %v395
        %533 = vrot.lane.b32.xlu0 %v515, 15
        %v534 = vpop.permute.xlu0 %533
        %535 = vrot.lane.b32.xlu0 %v516, 15
        %v536 = vpop.permute.xlu0 %535
        %v537 = vsel %vm402, %v534, %v536
        %v538 = vsel %vm402, %v536, %v534
        %v539 = vmul.f32 %v538, %v405
        %v540 = vmul.f32 %v537, %v406
        %541 = vrot.lane.b32.xlu0 %v515, 1
        %v542 = vpop.permute.xlu0 %541
        %543 = vrot.lane.b32.xlu0 %v516, 1
        %v544 = vpop.permute.xlu0 %543
        %v545 = vsel %vm413, %v542, %v544
        %v546 = vsel %vm413, %v544, %v542
        %v547 = vmul.f32 %v546, %v416
        %v548 = vmul.f32 %v545, %v417
        %549 = vrot.lane.b32.xlu0 %v515, 127
        %v550 = vpop.permute.xlu0 %549
        %551 = vrot.lane.b32.xlu0 %v516, 127
        %v552 = vpop.permute.xlu0 %551
        %v553 = vsel %vm424, %v550, %v552
        %v554 = vsel %vm424, %v552, %v550
        %v555 = vmul.f32 %v553, %v427
        %v556 = vmul.f32 %v554, %v428
        %557 = vrot.lane.b32.xlu0 %v515, 113
        %v558 = vpop.permute.xlu0 %557
        %559 = vrot.lane.b32.xlu0 %v516, 113
        %v560 = vpop.permute.xlu0 %559
        %v561 = vsel %vm435, %v558, %v560
        %v562 = vsel %vm435, %v560, %v558
        %v563 = vmul.f32 %v561, %v438
        %v564 = vmul.f32 %v562, %v439
        %565 = vrot.lane.b32.xlu0 %v515, 112
        %v566 = vpop.permute.xlu0 %565
        %567 = vrot.lane.b32.xlu0 %v516, 112
        %v568 = vpop.permute.xlu0 %567
        %v569 = vsel %vm446, %v566, %v568
        %v570 = vsel %vm446, %v568, %v566
        %v571 = vmul.f32 %v569, %v449
        %v572 = vmul.f32 %v570, %v450
        %573 = vrot.lane.b32.xlu0 %v515, 111
        %v574 = vpop.permute.xlu0 %573
        %575 = vrot.lane.b32.xlu0 %v516, 111
        %v576 = vpop.permute.xlu0 %575
        %v577 = vsel %vm457, %v574, %v576
        %v578 = vsel %vm457, %v576, %v574
        %v579 = vmul.f32 %v577, %v460
        %v580 = vmul.f32 %v578, %v461
        %v581 = vpack.c.bf16 %v531, %v523
        %v582 = vpack.c.bf16 %v532, %v524
        %v583 = vpack.c.bf16 %v547, %v539
        %v584 = vpack.c.bf16 %v548, %v540
        %v585 = vpack.c.bf16 %v555, %v515
        %v586 = vpack.c.bf16 %v556, %v516
        %v587 = vpack.c.bf16 %v571, %v563
        %v588 = vpack.c.bf16 %v572, %v564
        %v589 = vpack.c.bf16 %v579, %v579
        %v590 = vpack.c.bf16 %v580, %v580
        %v592 = vsel %vm474, %v364, 0
        %v595 = vsel %vm478, %v589, 0
        %v598 = vsel %vm478, %v590, 0
        %600 = vmatpush.bf16.msra.mxu0 0
        %601 = vmatpush.bf16.msra.mxu0 0
        %602 = vmatpush.bf16.msra.mxu0 0
        %603 = vmatpush.bf16.msra.mxu0 %v595
        %604 = vmatpush.bf16.msra.mxu0 %v587
        %605 = vmatpush.bf16.msra.mxu0 %v585
        %606 = vmatpush.bf16.msra.mxu0 %v583
        %607 = vmatpush.bf16.msra.mxu0 %v581
        %608 = vmatmul.bf16.gmra.mxu0 %v592
        %v609 = vpop.f32.mrf.mxu0
        %v610 = vadd.f32 0.0, %v609
        %v611 = vpop.f32.mrf.mxu0
        %612 = vdwg.mxu0
        %613 = vmatpush.bf16.msra.mxu0 0
        %614 = vmatpush.bf16.msra.mxu0 0
        %615 = vmatpush.bf16.msra.mxu0 0
        %616 = vmatpush.bf16.msra.mxu0 %v598
        %617 = vmatpush.bf16.msra.mxu0 %v588
        %618 = vmatpush.bf16.msra.mxu0 %v586
        %619 = vmatpush.bf16.msra.mxu0 %v584
        %620 = vmatpush.bf16.msra.mxu0 %v582
        %621 = vmatmul.bf16.gmra.mxu0 %v592
        %v622 = vpop.f32.mrf.mxu0
        %v623 = vadd.f32 0.0, %v622
        %v624 = vpop.f32.mrf.mxu0
        %625 = vdwg.mxu0
        %vm626 = vcmp.gt.f32.partialorder %v610, 0.0
        %vm627 = vcmp.gt.f32.partialorder %v623, 0.0
        %v628 = vmul.f32 %v610, 0.2
        %v629 = vmul.f32 %v623, 0.2
        %v630 = vsel %vm626, %v610, %v628
        %v631 = vsel %vm627, %v623, %v629
        %632 = vrot.lane.b32.xlu0 %v630, 17
        %v633 = vpop.permute.xlu0 %632
        %634 = vrot.lane.b32.xlu0 %v631, 17
        %v635 = vpop.permute.xlu0 %634
        %v636 = vsel %vm380, %v633, %v635
        %v637 = vsel %vm380, %v635, %v633
        %v638 = vmul.f32 %v637, %v383
        %v639 = vmul.f32 %v636, %v384
        %640 = vrot.lane.b32.xlu0 %v630, 16
        %v641 = vpop.permute.xlu0 %640
        %642 = vrot.lane.b32.xlu0 %v631, 16
        %v643 = vpop.permute.xlu0 %642
        %v644 = vsel %vm391, %v641, %v643
        %v645 = vsel %vm391, %v643, %v641
        %v646 = vmul.f32 %v645, %v394
        %v647 = vmul.f32 %v644, %v395
        %648 = vrot.lane.b32.xlu0 %v630, 15
        %v649 = vpop.permute.xlu0 %648
        %650 = vrot.lane.b32.xlu0 %v631, 15
        %v651 = vpop.permute.xlu0 %650
        %v652 = vsel %vm402, %v649, %v651
        %v653 = vsel %vm402, %v651, %v649
        %v654 = vmul.f32 %v653, %v405
        %v655 = vmul.f32 %v652, %v406
        %656 = vrot.lane.b32.xlu0 %v630, 1
        %v657 = vpop.permute.xlu0 %656
        %658 = vrot.lane.b32.xlu0 %v631, 1
        %v659 = vpop.permute.xlu0 %658
        %v660 = vsel %vm413, %v657, %v659
        %v661 = vsel %vm413, %v659, %v657
        %v662 = vmul.f32 %v661, %v416
        %v663 = vmul.f32 %v660, %v417
        %664 = vrot.lane.b32.xlu0 %v630, 127
        %v665 = vpop.permute.xlu0 %664
        %666 = vrot.lane.b32.xlu0 %v631, 127
        %v667 = vpop.permute.xlu0 %666
        %v668 = vsel %vm424, %v665, %v667
        %v669 = vsel %vm424, %v667, %v665
        %v670 = vmul.f32 %v668, %v427
        %v671 = vmul.f32 %v669, %v428
        %672 = vrot.lane.b32.xlu0 %v630, 113
        %v673 = vpop.permute.xlu0 %672
        %674 = vrot.lane.b32.xlu0 %v631, 113
        %v675 = vpop.permute.xlu0 %674
        %v676 = vsel %vm435, %v673, %v675
        %v677 = vsel %vm435, %v675, %v673
        %v678 = vmul.f32 %v676, %v438
        %v679 = vmul.f32 %v677, %v439
        %680 = vrot.lane.b32.xlu0 %v630, 112
        %v681 = vpop.permute.xlu0 %680
        %682 = vrot.lane.b32.xlu0 %v631, 112
        %v683 = vpop.permute.xlu0 %682
        %v684 = vsel %vm446, %v681, %v683
        %v685 = vsel %vm446, %v683, %v681
        %v686 = vmul.f32 %v684, %v449
        %v687 = vmul.f32 %v685, %v450
        %688 = vrot.lane.b32.xlu0 %v630, 111
        %v689 = vpop.permute.xlu0 %688
        %690 = vrot.lane.b32.xlu0 %v631, 111
        %v691 = vpop.permute.xlu0 %690
        %v692 = vsel %vm457, %v689, %v691
        %v693 = vsel %vm457, %v691, %v689
        %v694 = vmul.f32 %v692, %v460
        %v695 = vmul.f32 %v693, %v461
        %v696 = vpack.c.bf16 %v646, %v638
        %v697 = vpack.c.bf16 %v647, %v639
        %v698 = vpack.c.bf16 %v662, %v654
        %v699 = vpack.c.bf16 %v663, %v655
        %v700 = vpack.c.bf16 %v670, %v630
        %v701 = vpack.c.bf16 %v671, %v631
        %v702 = vpack.c.bf16 %v686, %v678
        %v703 = vpack.c.bf16 %v687, %v679
        %v704 = vpack.c.bf16 %v694, %v694
        %v705 = vpack.c.bf16 %v695, %v695
        %v706 = vld [vmem:[%s295] sm:$0xff]
        %v707 = vld [vmem:[%s295 + $0x8] sm:$0xff]
        %v709 = vsel %vm474, %v365, 0
        %v712 = vsel %vm478, %v704, 0
        %v715 = vsel %vm478, %v705, 0
        %717 = vmatpush.bf16.msra.mxu0 0
        %718 = vmatpush.bf16.msra.mxu0 0
        %719 = vmatpush.bf16.msra.mxu0 0
        %720 = vmatpush.bf16.msra.mxu0 %v712
        %721 = vmatpush.bf16.msra.mxu0 %v702
        %722 = vmatpush.bf16.msra.mxu0 %v700
        %723 = vmatpush.bf16.msra.mxu0 %v698
        %724 = vmatpush.bf16.msra.mxu0 %v696
        %725 = vmatmul.bf16.gmra.mxu0 %v709
        %v726 = vpop.f32.mrf.mxu0
        %v727 = vadd.f32 %v706, %v726
        %v728 = vpop.f32.mrf.mxu0
        %729 = vdwg.mxu0
        %730 = vmatpush.bf16.msra.mxu0 0
        %731 = vmatpush.bf16.msra.mxu0 0
        %732 = vmatpush.bf16.msra.mxu0 0
        %733 = vmatpush.bf16.msra.mxu0 %v715
        %734 = vmatpush.bf16.msra.mxu0 %v703
        %735 = vmatpush.bf16.msra.mxu0 %v701
        %736 = vmatpush.bf16.msra.mxu0 %v699
        %737 = vmatpush.bf16.msra.mxu0 %v697
        %738 = vmatmul.bf16.gmra.mxu0 %v709
        %v739 = vpop.f32.mrf.mxu0
        %v740 = vadd.f32 %v707, %v739
        %v741 = vpop.f32.mrf.mxu0
        %742 = vdwg.mxu0
        %743 = vst [vmem:[%s354] sm:$0xff] %v727
        %744 = vst [vmem:[%s354 + $0x8] sm:$0xff] %v740
        %s745 = sand.u32 %s171, 1
        %s746 = scalar_lea.sflag [#allocation4], %s745
        %s747 = sand.u32 %s171, 1
        %s748 = smul.addr %s747, 16
        %s749 = scalar_lea.vmem [#allocation11], %s748
        // Predicated region
        $region65: #{tpu_custom_call.1} parent=43 // pred_check
          %p750 = pneg %p181
        $region66: #{tpu_custom_call.1} parent=43 // pred_check_branch
          %752 = sbr.rel (%p750) target = $region68
        $region67: #{tpu_custom_call.1} parent=43 // pred_region
          %s753 = smul.u32 2, %s27
          %755 = vsyncadd %s746, 0
          %s756 = smul.addr %s753, 8
          %s757 = scalar_lea.hbm %s6, %s756
          %s759 = sshll.u32 %s749, 4
          %s760 = int_to_ptr.vmem [resolvable:$true] %s759
          %s761 = sshll.u32 %s757, 4
          %s762 = int_to_ptr.hbm [resolvable:$true] %s761
          %764 = dma.vmem_to_hbm [thread:$0]  %s760, 256, %s762, %s746
        $region68: #{tpu_custom_call.1} parent=43 // pred_fallthru
          _
      $region44: #{tpu_custom_call.1} parent=5 // pred_fallthru
        _
      %p765 = scmp.le.s32.totalorder 2, %s22
      // Predicated region
      $region69: #{tpu_custom_call.1} parent=5 // pred_check
        %p766 = pneg %p765
      $region70: #{tpu_custom_call.1} parent=5 // pred_check_branch
        %768 = sbr.rel (%p766) target = $region72
      $region71: #{tpu_custom_call.1} parent=5 // pred_region
        %s769 = ssub.s32 %s22, 2
        // Predicated region
        $region73: #{tpu_custom_call.1} parent=71 // pred_check
          %p770 = pneg %p187
        $region74: #{tpu_custom_call.1} parent=71 // pred_check_branch
          %772 = sbr.rel (%p770) target = $region76
        $region75: #{tpu_custom_call.1} parent=71 // pred_region
          %s773 = sand.u32 %s172, 1
          %s774 = scalar_lea.sflag [#allocation4], %s773
          %s775 = sand.u32 %s172, 1
          %s776 = smul.addr %s775, 16
          %s777 = scalar_lea.vmem [#allocation11], %s776
          %779 = dma.done %s774, 256
        $region76: #{tpu_custom_call.1} parent=71 // pred_fallthru
          _
      $region72: #{tpu_custom_call.1} parent=5 // pred_fallthru
        _
    $region6: #{tpu_custom_call.1} parent=1 // loop_footer
      %s26 = sadd.s32 1, %s22
    $region7: #{tpu_custom_call.1} parent=1 // loop_footer_branch
      %21 = sbr.rel target = $region3
    $region8: #{tpu_custom_call.1} parent=1 // loop_exit
      _
    %780 = vsyncpa [#allocation3], 1
    %s781 = scalar_lea.sflag [#allocation3], 1
    %782 = vsyncpa %s781, 1
    %783 = vsyncpa [#allocation6], 1
    %s784 = scalar_lea.sflag [#allocation6], 1
    %785 = vsyncpa %s784, 1
    %786 = vsyncpa [#allocation9], 1
    %787 = vsyncpa [#allocation4], 1
    %s788 = scalar_lea.sflag [#allocation4], 1
    %789 = vsyncpa %s788, 1

</llo_original>
